<compile_context>
chip_gen: v6e
topology: v6e:2x2x1
jax: 0.10.0
libtpu: 0.0.40
codegen_flags: <defaults>
</compile_context>

<pallas_src>
import functools

import jax
import jax.numpy as jnp
from jax.experimental import pallas as pl
from jax.experimental.pallas import tpu as pltpu

_EPS = 1e-5
_K_PAD = 128  # 27*Cin = 108 zero-padded to 128: bf16 pack quantum, one MXU K-pass


def _make_conv_block_kernel(B, Cout, DHW):
    def _inorm_relu(t):
        # InstanceNorm (affine=False, biased variance) over the lane (spatial)
        # axis, then ReLU.  xc is hoisted and reused (VPU subtract done once).
        m = jnp.mean(t, axis=1, keepdims=True)
        xc = t - m
        v = jnp.mean(xc * xc, axis=1, keepdims=True)
        return jnp.maximum(xc * jax.lax.rsqrt(v + _EPS), 0.0)

    def kernel(patch_ref, w1_ref, w2_ref, out_ref):
        # patch_ref: (K_PAD, B*DHW) bf16 im2col slab (batch-major lanes)
        # w1_ref:    (Cout, K_PAD)  bf16
        # w2_ref:    (Cout, Cout)   bf16
        # out_ref:   (B, Cout, DHW) f32

        # ---- Conv3d 3x3x3 as one MXU matmul over all fused batch elems ----
        acc = jnp.dot(w1_ref[...], patch_ref[...],
                      preferred_element_type=jnp.float32)      # (Cout, B*DHW) f32

        # ---- per-batch-element: InstanceNorm+ReLU, 1x1x1 conv, InstanceNorm+ReLU
        for b in range(B):  # static unroll; 512-wide lane slices stay aligned
            sl = acc[:, b * DHW:(b + 1) * DHW]                  # (Cout, DHW)
            y = _inorm_relu(sl)
            z = jnp.dot(w2_ref[...], y.astype(jnp.bfloat16),
                        preferred_element_type=jnp.float32)     # 1x1x1 conv
            out_ref[b] = _inorm_relu(z).astype(out_ref.dtype)   # unmasked lane-dense store

    return kernel


@functools.partial(jax.jit, static_argnames=("batch_per_step",))
def _conv_block_impl(x_ncdhw, w1, w2, *, batch_per_step):
    N, Cin, D, H, W = x_ncdhw.shape
    Cout = w1.shape[0]
    DHW = D * H * W
    K1 = 27 * Cin
    B = batch_per_step
    assert N % B == 0 and K1 <= _K_PAD and DHW % 128 == 0

    # ---- wrapper-side im2col, in bf16 (cast BEFORE pad/stack: half the bytes) ----
    x = x_ncdhw.astype(jnp.bfloat16)
    xpad = jnp.pad(x, ((0, 0), (0, 0), (1, 1), (1, 1), (1, 1)))
    taps = [xpad[:, :, kd:kd + D, kh:kh + H, kw:kw + W]
            for kd in range(3) for kh in range(3) for kw in range(3)]
    patches = jnp.stack(taps, axis=0)                     # (27, N, Cin, D, H, W)
    patches = jnp.transpose(patches, (0, 2, 1, 3, 4, 5))  # (27, Cin, N, D, H, W)
    patches = patches.reshape(K1, N * DHW)                # K=(kd,kh,kw,cin), lanes=(n,dhw)
    patches = jnp.pad(patches, ((0, _K_PAD - K1), (0, 0)))  # zero K rows are inert
    # TODO(synk): at real VoxelMorph volumes (e.g. 160x192x224) do NOT
    # materialize the 27x im2col slab in HBM: DMA a haloed (Cin, Dtile+2, H, W)
    # tile to VMEM and form the taps (or 27 shifted matmuls) in-kernel with
    # two-pass InstanceNorm stats; size tiles against v7x's 64 MiB VMEM (set
    # vmem_limit_bytes explicitly) and keep >=2 parallel grid units for its 2 TCs.

    # (Cout, Cin, 3,3,3) -> (Cout, 27*Cin) in tap order (kd,kh,kw,cin), K-padded.
    w1_mat = jnp.transpose(w1, (0, 2, 3, 4, 1)).reshape(Cout, K1)
    w1_mat = jnp.pad(w1_mat, ((0, 0), (0, _K_PAD - K1))).astype(jnp.bfloat16)
    w2_mat = w2.astype(jnp.bfloat16)

    out = pl.pallas_call(
        _make_conv_block_kernel(B, Cout, DHW),
        out_shape=jax.ShapeDtypeStruct((N, Cout, DHW), jnp.float32),
        grid=(N // B,),
        in_specs=[
            pl.BlockSpec((_K_PAD, B * DHW), lambda g: (0, g)),
            pl.BlockSpec((Cout, _K_PAD), lambda g: (0, 0)),
            pl.BlockSpec((Cout, Cout), lambda g: (0, 0)),
        ],
        out_specs=pl.BlockSpec((B, Cout, DHW), lambda g: (g, 0, 0)),
        compiler_params=pltpu.CompilerParams(
            dimension_semantics=("parallel",)),
    )(patches, w1_mat, w2_mat)

    # (N, Cout, DHW) is already channel-major: just reshape back to NCDHW.
    return out.reshape(N, Cout, D, H, W)


def _batch_per_step(n_batch):
    """Fuse the whole batch into one grid step on single-TC chips (v5e/v6e);
    keep >=2 parallel grid steps on v7x (2 TensorCores per chip)."""
    try:
        kind = jax.devices()[0].device_kind.lower()
        two_tensorcores = "v7" in kind
    except Exception:
        two_tensorcores = False
    if two_tensorcores and n_batch >= 2:
        return 1          # grid=(N,) parallel steps feed both TCs
    return n_batch        # single TC: one grid step, one fixed overhead


def conv_block_pallas(x_ncdhw, w1, b1, w2, b2):
    """
    x_ncdhw: (N, Cin, D, H, W) f32
    w1:      (Cout, Cin, 3, 3, 3)   (PyTorch Conv3d weight layout)
    b1:      (Cout,)
    w2:      (Cout, Cout)           (PyTorch 1x1x1 Conv3d weight, squeezed)
    b2:      (Cout,)
    returns  (N, Cout, D, H, W) f32
    """
    # Biases dropped: exactly cancelled because InstanceNorm3d is affine=False
    # with full-spatial per-(N,C) stats (see module-level comment).
    del b1, b2
    return _conv_block_impl(
        x_ncdhw, w1, w2, batch_per_step=_batch_per_step(x_ncdhw.shape[0]))


def conv_block_reference(x, w1, b1, w2, b2):
    """Pure-JAX f32 reference mirroring the PyTorch forward pass (biases kept)."""
    Cout = w1.shape[0]

    def inorm(t):
        m = jnp.mean(t, axis=(2, 3, 4), keepdims=True)
        v = jnp.mean(jnp.square(t - m), axis=(2, 3, 4), keepdims=True)
        return (t - m) * jax.lax.rsqrt(v + _EPS)

    y = jax.lax.conv_general_dilated(
        x, w1, (1, 1, 1), [(1, 1)] * 3,
        dimension_numbers=("NCDHW", "OIDHW", "NCDHW"))
    y = y + b1.reshape(1, -1, 1, 1, 1)
    y = jnp.maximum(inorm(y), 0.0)

    z = jax.lax.conv_general_dilated(
        y, w2.reshape(Cout, Cout, 1, 1, 1), (1, 1, 1), [(0, 0)] * 3,
        dimension_numbers=("NCDHW", "OIDHW", "NCDHW"))
    z = z + b2.reshape(1, -1, 1, 1, 1)
    return jnp.maximum(inorm(z), 0.0)


if __name__ == "__main__":
    key = jax.random.PRNGKey(0)
    k_x, k_w1, k_b1, k_w2, k_b2 = jax.random.split(key, 5)

    # ConvBlock(ndims=3, in_channels=4, out_channels=8) at small spatial size.
    N, Cin, Cout = 2, 4, 8
    D = H = W = 8

    x = jax.random.normal(k_x, (N, Cin, D, H, W), dtype=jnp.float32)
    # Deterministic synthetic parameters (PyTorch weight layouts).
    w1 = jax.random.normal(k_w1, (Cout, Cin, 3, 3, 3), dtype=jnp.float32) * 0.1
    b1 = jax.random.normal(k_b1, (Cout,), dtype=jnp.float32) * 0.1
    w2 = jax.random.normal(k_w2, (Cout, Cout), dtype=jnp.float32) * 0.1
    b2 = jax.random.normal(k_b2, (Cout,), dtype=jnp.float32) * 0.1

    out = jax.block_until_ready(conv_block_pallas(x, w1, b1, w2, b2))
    ref = conv_block_reference(x, w1, b1, w2, b2)

    assert out.shape == (N, Cout, D, H, W)
    # bf16 MXU operands (f32 accumulation / norm math) -> bf16-level tolerance.
    max_err = float(jnp.max(jnp.abs(out - ref)))
    assert jnp.allclose(out, ref, rtol=5e-2, atol=5e-2), max_err

    print("KERNEL_OK")
</pallas_src>

<mosaic_0001>
module attributes {stable_mosaic.version = 11 : i64} {
  func.func @kernel(%arg0: i32, %arg1: memref<128x1024xbf16, #tpu.memory_space<vmem>>, %arg2: memref<8x128xbf16, #tpu.memory_space<vmem>>, %arg3: memref<8x8xbf16, #tpu.memory_space<vmem>>, %arg4: memref<2x8x512xf32, #tpu.memory_space<vmem>>) attributes {dimension_semantics = [#tpu.dimension_semantics<parallel>], iteration_bounds = array<i64: 1>, scalar_prefetch = 0 : i64, scratch_operands = 0 : i64, tpu.core_type = #tpu.core_type<tc>, window_params = [{transform_indices = @transform_0, window_bounds = array<i64: 128, 1024>}, {pipeline_mode = #tpu.pipeline_mode<synchronous>, transform_indices = @transform_1, window_bounds = array<i64: 8, 128>}, {pipeline_mode = #tpu.pipeline_mode<synchronous>, transform_indices = @transform_2, window_bounds = array<i64: 8, 8>}, {transform_indices = @transform_3, window_bounds = array<i64: 2, 8, 512>}]} {
    %c0 = arith.constant 0 : index
    %c0_0 = arith.constant 0 : index
    %0 = vector.load %arg2[%c0, %c0_0] : memref<8x128xbf16, #tpu.memory_space<vmem>>, vector<8x128xbf16>
    %c0_1 = arith.constant 0 : index
    %c0_2 = arith.constant 0 : index
    %1 = vector.load %arg1[%c0_1, %c0_2] : memref<128x1024xbf16, #tpu.memory_space<vmem>>, vector<128x1024xbf16>
    %cst = arith.constant dense<0.000000e+00> : vector<8x1024xf32>
    %2 = tpu.matmul %0, %1, %cst {dimension_numbers = #tpu.dot_dimension_numbers<[1], [0], [0], [1], [0, 0, 1, 1], [], []>} : vector<8x128xbf16>, vector<128x1024xbf16>, vector<8x1024xf32> -> vector<8x1024xf32>
    %3 = vector.extract_strided_slice %2 {offsets = [0, 0], sizes = [8, 512], strides = [1, 1]} : vector<8x1024xf32> to vector<8x512xf32>
    %cst_3 = arith.constant dense<0.000000e+00> : vector<8xf32>
    %4 = vector.multi_reduction <add>, %3, %cst_3 [1] : vector<8x512xf32> to vector<8xf32>
    %5 = vector.shape_cast %4 : vector<8xf32> to vector<8x1xf32>
    %cst_4 = arith.constant 5.120000e+02 : f32
    %6 = vector.broadcast %cst_4 : f32 to vector<8x1xf32>
    %7 = arith.divf %5, %6 : vector<8x1xf32>
    %8 = vector.broadcast %7 : vector<8x1xf32> to vector<8x512xf32>
    %9 = arith.subf %3, %8 : vector<8x512xf32>
    %10 = arith.mulf %9, %9 : vector<8x512xf32>
    %cst_5 = arith.constant dense<0.000000e+00> : vector<8xf32>
    %11 = vector.multi_reduction <add>, %10, %cst_5 [1] : vector<8x512xf32> to vector<8xf32>
    %12 = vector.shape_cast %11 : vector<8xf32> to vector<8x1xf32>
    %cst_6 = arith.constant 5.120000e+02 : f32
    %13 = vector.broadcast %cst_6 : f32 to vector<8x1xf32>
    %14 = arith.divf %12, %13 : vector<8x1xf32>
    %cst_7 = arith.constant 9.99999974E-6 : f32
    %15 = vector.broadcast %cst_7 : f32 to vector<8x1xf32>
    %16 = arith.addf %14, %15 : vector<8x1xf32>
    %17 = math.rsqrt %16 : vector<8x1xf32>
    %18 = vector.broadcast %17 : vector<8x1xf32> to vector<8x512xf32>
    %19 = arith.mulf %9, %18 : vector<8x512xf32>
    %cst_8 = arith.constant 0.000000e+00 : f32
    %20 = vector.broadcast %cst_8 : f32 to vector<8x512xf32>
    %21 = arith.maximumf %19, %20 : vector<8x512xf32>
    %c0_9 = arith.constant 0 : index
    %c0_10 = arith.constant 0 : index
    %22 = vector.load %arg3[%c0_9, %c0_10] : memref<8x8xbf16, #tpu.memory_space<vmem>>, vector<8x8xbf16>
    %23 = arith.truncf %21 : vector<8x512xf32> to vector<8x512xbf16>
    %cst_11 = arith.constant dense<0.000000e+00> : vector<8x512xf32>
    %24 = tpu.matmul %22, %23, %cst_11 {dimension_numbers = #tpu.dot_dimension_numbers<[1], [0], [0], [1], [0, 0, 1, 1], [], []>} : vector<8x8xbf16>, vector<8x512xbf16>, vector<8x512xf32> -> vector<8x512xf32>
    %cst_12 = arith.constant dense<0.000000e+00> : vector<8xf32>
    %25 = vector.multi_reduction <add>, %24, %cst_12 [1] : vector<8x512xf32> to vector<8xf32>
    %26 = vector.shape_cast %25 : vector<8xf32> to vector<8x1xf32>
    %cst_13 = arith.constant 5.120000e+02 : f32
    %27 = vector.broadcast %cst_13 : f32 to vector<8x1xf32>
    %28 = arith.divf %26, %27 : vector<8x1xf32>
    %29 = vector.broadcast %28 : vector<8x1xf32> to vector<8x512xf32>
    %30 = arith.subf %24, %29 : vector<8x512xf32>
    %31 = arith.mulf %30, %30 : vector<8x512xf32>
    %cst_14 = arith.constant dense<0.000000e+00> : vector<8xf32>
    %32 = vector.multi_reduction <add>, %31, %cst_14 [1] : vector<8x512xf32> to vector<8xf32>
    %33 = vector.shape_cast %32 : vector<8xf32> to vector<8x1xf32>
    %cst_15 = arith.constant 5.120000e+02 : f32
    %34 = vector.broadcast %cst_15 : f32 to vector<8x1xf32>
    %35 = arith.divf %33, %34 : vector<8x1xf32>
    %cst_16 = arith.constant 9.99999974E-6 : f32
    %36 = vector.broadcast %cst_16 : f32 to vector<8x1xf32>
    %37 = arith.addf %35, %36 : vector<8x1xf32>
    %38 = math.rsqrt %37 : vector<8x1xf32>
    %39 = vector.broadcast %38 : vector<8x1xf32> to vector<8x512xf32>
    %40 = arith.mulf %30, %39 : vector<8x512xf32>
    %cst_17 = arith.constant 0.000000e+00 : f32
    %41 = vector.broadcast %cst_17 : f32 to vector<8x512xf32>
    %42 = arith.maximumf %40, %41 : vector<8x512xf32>
    %c0_18 = arith.constant 0 : index
    %c0_19 = arith.constant 0 : index
    %c0_20 = arith.constant 0 : index
    %43 = vector.load %arg4[%c0_18, %c0_19, %c0_20] : memref<2x8x512xf32, #tpu.memory_space<vmem>>, vector<1x8x512xf32>
    %44 = vector.shape_cast %43 : vector<1x8x512xf32> to vector<8x512xf32>
    %45 = vector.shape_cast %42 : vector<8x512xf32> to vector<1x8x512xf32>
    tpu.vector_store %arg4[%c0_18, %c0_19, %c0_20], %45 {strides = array<i32>} : memref<2x8x512xf32, #tpu.memory_space<vmem>>, vector<1x8x512xf32>,
    %46 = vector.extract_strided_slice %2 {offsets = [0, 512], sizes = [8, 512], strides = [1, 1]} : vector<8x1024xf32> to vector<8x512xf32>
    %cst_21 = arith.constant dense<0.000000e+00> : vector<8xf32>
    %47 = vector.multi_reduction <add>, %46, %cst_21 [1] : vector<8x512xf32> to vector<8xf32>
    %48 = vector.shape_cast %47 : vector<8xf32> to vector<8x1xf32>
    %cst_22 = arith.constant 5.120000e+02 : f32
    %49 = vector.broadcast %cst_22 : f32 to vector<8x1xf32>
    %50 = arith.divf %48, %49 : vector<8x1xf32>
    %51 = vector.broadcast %50 : vector<8x1xf32> to vector<8x512xf32>
    %52 = arith.subf %46, %51 : vector<8x512xf32>
    %53 = arith.mulf %52, %52 : vector<8x512xf32>
    %cst_23 = arith.constant dense<0.000000e+00> : vector<8xf32>
    %54 = vector.multi_reduction <add>, %53, %cst_23 [1] : vector<8x512xf32> to vector<8xf32>
    %55 = vector.shape_cast %54 : vector<8xf32> to vector<8x1xf32>
    %cst_24 = arith.constant 5.120000e+02 : f32
    %56 = vector.broadcast %cst_24 : f32 to vector<8x1xf32>
    %57 = arith.divf %55, %56 : vector<8x1xf32>
    %cst_25 = arith.constant 9.99999974E-6 : f32
    %58 = vector.broadcast %cst_25 : f32 to vector<8x1xf32>
    %59 = arith.addf %57, %58 : vector<8x1xf32>
    %60 = math.rsqrt %59 : vector<8x1xf32>
    %61 = vector.broadcast %60 : vector<8x1xf32> to vector<8x512xf32>
    %62 = arith.mulf %52, %61 : vector<8x512xf32>
    %cst_26 = arith.constant 0.000000e+00 : f32
    %63 = vector.broadcast %cst_26 : f32 to vector<8x512xf32>
    %64 = arith.maximumf %62, %63 : vector<8x512xf32>
    %c0_27 = arith.constant 0 : index
    %c0_28 = arith.constant 0 : index
    %65 = vector.load %arg3[%c0_27, %c0_28] : memref<8x8xbf16, #tpu.memory_space<vmem>>, vector<8x8xbf16>
    %66 = arith.truncf %64 : vector<8x512xf32> to vector<8x512xbf16>
    %cst_29 = arith.constant dense<0.000000e+00> : vector<8x512xf32>
    %67 = tpu.matmul %65, %66, %cst_29 {dimension_numbers = #tpu.dot_dimension_numbers<[1], [0], [0], [1], [0, 0, 1, 1], [], []>} : vector<8x8xbf16>, vector<8x512xbf16>, vector<8x512xf32> -> vector<8x512xf32>
    %cst_30 = arith.constant dense<0.000000e+00> : vector<8xf32>
    %68 = vector.multi_reduction <add>, %67, %cst_30 [1] : vector<8x512xf32> to vector<8xf32>
    %69 = vector.shape_cast %68 : vector<8xf32> to vector<8x1xf32>
    %cst_31 = arith.constant 5.120000e+02 : f32
    %70 = vector.broadcast %cst_31 : f32 to vector<8x1xf32>
    %71 = arith.divf %69, %70 : vector<8x1xf32>
    %72 = vector.broadcast %71 : vector<8x1xf32> to vector<8x512xf32>
    %73 = arith.subf %67, %72 : vector<8x512xf32>
    %74 = arith.mulf %73, %73 : vector<8x512xf32>
    %cst_32 = arith.constant dense<0.000000e+00> : vector<8xf32>
    %75 = vector.multi_reduction <add>, %74, %cst_32 [1] : vector<8x512xf32> to vector<8xf32>
    %76 = vector.shape_cast %75 : vector<8xf32> to vector<8x1xf32>
    %cst_33 = arith.constant 5.120000e+02 : f32
    %77 = vector.broadcast %cst_33 : f32 to vector<8x1xf32>
    %78 = arith.divf %76, %77 : vector<8x1xf32>
    %cst_34 = arith.constant 9.99999974E-6 : f32
    %79 = vector.broadcast %cst_34 : f32 to vector<8x1xf32>
    %80 = arith.addf %78, %79 : vector<8x1xf32>
    %81 = math.rsqrt %80 : vector<8x1xf32>
    %82 = vector.broadcast %81 : vector<8x1xf32> to vector<8x512xf32>
    %83 = arith.mulf %73, %82 : vector<8x512xf32>
    %cst_35 = arith.constant 0.000000e+00 : f32
    %84 = vector.broadcast %cst_35 : f32 to vector<8x512xf32>
    %85 = arith.maximumf %83, %84 : vector<8x512xf32>
    %c1 = arith.constant 1 : index
    %c0_36 = arith.constant 0 : index
    %c0_37 = arith.constant 0 : index
    %86 = vector.load %arg4[%c1, %c0_36, %c0_37] : memref<2x8x512xf32, #tpu.memory_space<vmem>>, vector<1x8x512xf32>
    %87 = vector.shape_cast %86 : vector<1x8x512xf32> to vector<8x512xf32>
    %88 = vector.shape_cast %85 : vector<8x512xf32> to vector<1x8x512xf32>
    tpu.vector_store %arg4[%c1, %c0_36, %c0_37], %88 {strides = array<i32>} : memref<2x8x512xf32, #tpu.memory_space<vmem>>, vector<1x8x512xf32>,
    return
  }
  func.func @transform_0(%arg0: i32) -> (i32, i32) {
    %c0_i32 = arith.constant 0 : i32
    %c0_i32_0 = arith.constant 0 : i32
    return %c0_i32, %arg0 : i32, i32
  }
  func.func @transform_1(%arg0: i32) -> (i32, i32) {
    %c0_i32 = arith.constant 0 : i32
    %c0_i32_0 = arith.constant 0 : i32
    %c0_i32_1 = arith.constant 0 : i32
    return %c0_i32, %c0_i32_0 : i32, i32
  }
  func.func @transform_2(%arg0: i32) -> (i32, i32) {
    %c0_i32 = arith.constant 0 : i32
    %c0_i32_0 = arith.constant 0 : i32
    %c0_i32_1 = arith.constant 0 : i32
    return %c0_i32, %c0_i32_0 : i32, i32
  }
  func.func @transform_3(%arg0: i32) -> (i32, i32, i32) {
    %c0_i32 = arith.constant 0 : i32
    %c0_i32_0 = arith.constant 0 : i32
    %c0_i32_1 = arith.constant 0 : i32
    return %arg0, %c0_i32, %c0_i32_0 : i32, i32, i32
  }
}

</mosaic_0001>

<llo_original>
// kernel: _conv_block_impl.1
$region0: #{_conv_block_impl.1}
  #allocation0 [shape = 'u32[]', space=smem, size = 0x4, offset = 0x4, fixed_abs, tag = 'smem constant byte address 0x4 - core index']
  #allocation1 [shape = 'u32[144,128]{1,0:T(1,128)}', space=vmem, size = 0x12000, scoped, tag = 'internal scratch']
  %s0 = inlined_call_operand.vmem [shape: bf16[128,1024], index: 0, kind: input, shape index: {}]
  %s1 = inlined_call_operand.vmem [shape: bf16[8,128], index: 1, kind: input, shape index: {}]
  %s2 = inlined_call_operand.vmem [shape: bf16[8,8], index: 2, kind: input, shape index: {}]
  %s3 = inlined_call_operand.vmem [shape: f32[2,8,512], index: 3, kind: output, shape index: {}]
  %s4 = sld [smem:[#allocation0]]
  $region22: #{_conv_block_impl.1} parent=0
    _
  %s6 = ssub.s32 1, %s4
  %s7 = scalar_select 0, %s6, %s4
  // Predicated region
  $region2: #{_conv_block_impl.1} parent=0 // pred_check
    _
  $region3: #{_conv_block_impl.1} parent=0 // pred_check_branch
    %9 = sbr.rel (0) target = $region5
  $region4: #{_conv_block_impl.1} parent=0 // pred_region
    _
  $region5: #{_conv_block_impl.1} parent=0 // pred_fallthru
    _
  // Predicated region
  $region6: #{_conv_block_impl.1} parent=0 // pred_check
    _
  $region7: #{_conv_block_impl.1} parent=0 // pred_check_branch
    %11 = sbr.rel (0) target = $region9
  $region8: #{_conv_block_impl.1} parent=0 // pred_region
    _
  $region9: #{_conv_block_impl.1} parent=0 // pred_fallthru
    _
  // Predicated region
  $region10: #{_conv_block_impl.1} parent=0 // pred_check
    _
  $region11: #{_conv_block_impl.1} parent=0 // pred_check_branch
    %13 = sbr.rel (0) target = $region13
  $region12: #{_conv_block_impl.1} parent=0 // pred_region
    _
  $region13: #{_conv_block_impl.1} parent=0 // pred_fallthru
    _
  %v15 = vld [vmem:[%s1] sm:$0xf]
  %v16 = vld [vmem:[%s0] sm:$0xff]
  %v17 = vld [vmem:[%s0 + $0x8] sm:$0xff]
  %v18 = vld [vmem:[%s0 + $0x10] sm:$0xff]
  %v19 = vld [vmem:[%s0 + $0x18] sm:$0xff]
  %v20 = vld [vmem:[%s0 + $0x20] sm:$0xff]
  %v21 = vld [vmem:[%s0 + $0x28] sm:$0xff]
  %v22 = vld [vmem:[%s0 + $0x30] sm:$0xff]
  %v23 = vld [vmem:[%s0 + $0x38] sm:$0xff]
  %v24 = vld [vmem:[%s0 + $0x40] sm:$0xff]
  %v25 = vld [vmem:[%s0 + $0x48] sm:$0xff]
  %v26 = vld [vmem:[%s0 + $0x50] sm:$0xff]
  %v27 = vld [vmem:[%s0 + $0x58] sm:$0xff]
  %v28 = vld [vmem:[%s0 + $0x60] sm:$0xff]
  %v29 = vld [vmem:[%s0 + $0x68] sm:$0xff]
  %v30 = vld [vmem:[%s0 + $0x70] sm:$0xff]
  %v31 = vld [vmem:[%s0 + $0x78] sm:$0xff]
  %v32 = vld [vmem:[%s0 + $0x80] sm:$0xff]
  %v33 = vld [vmem:[%s0 + $0x88] sm:$0xff]
  %v34 = vld [vmem:[%s0 + $0x90] sm:$0xff]
  %v35 = vld [vmem:[%s0 + $0x98] sm:$0xff]
  %v36 = vld [vmem:[%s0 + $0xa0] sm:$0xff]
  %v37 = vld [vmem:[%s0 + $0xa8] sm:$0xff]
  %v38 = vld [vmem:[%s0 + $0xb0] sm:$0xff]
  %v39 = vld [vmem:[%s0 + $0xb8] sm:$0xff]
  %v40 = vld [vmem:[%s0 + $0xc0] sm:$0xff]
  %v41 = vld [vmem:[%s0 + $0xc8] sm:$0xff]
  %v42 = vld [vmem:[%s0 + $0xd0] sm:$0xff]
  %v43 = vld [vmem:[%s0 + $0xd8] sm:$0xff]
  %v44 = vld [vmem:[%s0 + $0xe0] sm:$0xff]
  %v45 = vld [vmem:[%s0 + $0xe8] sm:$0xff]
  %v46 = vld [vmem:[%s0 + $0xf0] sm:$0xff]
  %v47 = vld [vmem:[%s0 + $0xf8] sm:$0xff]
  %v48 = vld [vmem:[%s0 + $0x100] sm:$0xff]
  %v49 = vld [vmem:[%s0 + $0x108] sm:$0xff]
  %v50 = vld [vmem:[%s0 + $0x110] sm:$0xff]
  %v51 = vld [vmem:[%s0 + $0x118] sm:$0xff]
  %v52 = vld [vmem:[%s0 + $0x120] sm:$0xff]
  %v53 = vld [vmem:[%s0 + $0x128] sm:$0xff]
  %v54 = vld [vmem:[%s0 + $0x130] sm:$0xff]
  %v55 = vld [vmem:[%s0 + $0x138] sm:$0xff]
  %v56 = vld [vmem:[%s0 + $0x140] sm:$0xff]
  %v57 = vld [vmem:[%s0 + $0x148] sm:$0xff]
  %v58 = vld [vmem:[%s0 + $0x150] sm:$0xff]
  %v59 = vld [vmem:[%s0 + $0x158] sm:$0xff]
  %v60 = vld [vmem:[%s0 + $0x160] sm:$0xff]
  %v61 = vld [vmem:[%s0 + $0x168] sm:$0xff]
  %v62 = vld [vmem:[%s0 + $0x170] sm:$0xff]
  %v63 = vld [vmem:[%s0 + $0x178] sm:$0xff]
  %v64 = vld [vmem:[%s0 + $0x180] sm:$0xff]
  %v65 = vld [vmem:[%s0 + $0x188] sm:$0xff]
  %v66 = vld [vmem:[%s0 + $0x190] sm:$0xff]
  %v67 = vld [vmem:[%s0 + $0x198] sm:$0xff]
  %v68 = vld [vmem:[%s0 + $0x1a0] sm:$0xff]
  %v69 = vld [vmem:[%s0 + $0x1a8] sm:$0xff]
  %v70 = vld [vmem:[%s0 + $0x1b0] sm:$0xff]
  %v71 = vld [vmem:[%s0 + $0x1b8] sm:$0xff]
  %v72 = vld [vmem:[%s0 + $0x1c0] sm:$0xff]
  %v73 = vld [vmem:[%s0 + $0x1c8] sm:$0xff]
  %v74 = vld [vmem:[%s0 + $0x1d0] sm:$0xff]
  %v75 = vld [vmem:[%s0 + $0x1d8] sm:$0xff]
  %v76 = vld [vmem:[%s0 + $0x1e0] sm:$0xff]
  %v77 = vld [vmem:[%s0 + $0x1e8] sm:$0xff]
  %v78 = vld [vmem:[%s0 + $0x1f0] sm:$0xff]
  %v79 = vld [vmem:[%s0 + $0x1f8] sm:$0xff]
  %v144 = vunpack.c.l.b16 %v16
  %v145 = vunpack.c.h.b16 %v16
  %v146 = vunpack.c.l.b16 %v17
  %v147 = vunpack.c.h.b16 %v17
  %v148 = vunpack.c.l.b16 %v18
  %v149 = vunpack.c.h.b16 %v18
  %v150 = vunpack.c.l.b16 %v19
  %v151 = vunpack.c.h.b16 %v19
  %v152 = vunpack.c.l.b16 %v20
  %v153 = vunpack.c.h.b16 %v20
  %v154 = vunpack.c.l.b16 %v21
  %v155 = vunpack.c.h.b16 %v21
  %v156 = vunpack.c.l.b16 %v22
  %v157 = vunpack.c.h.b16 %v22
  %v158 = vunpack.c.l.b16 %v23
  %v159 = vunpack.c.h.b16 %v23
  %v160 = vunpack.c.l.b16 %v24
  %v161 = vunpack.c.h.b16 %v24
  %v162 = vunpack.c.l.b16 %v25
  %v163 = vunpack.c.h.b16 %v25
  %v164 = vunpack.c.l.b16 %v26
  %v165 = vunpack.c.h.b16 %v26
  %v166 = vunpack.c.l.b16 %v27
  %v167 = vunpack.c.h.b16 %v27
  %v168 = vunpack.c.l.b16 %v28
  %v169 = vunpack.c.h.b16 %v28
  %v170 = vunpack.c.l.b16 %v29
  %v171 = vunpack.c.h.b16 %v29
  %v172 = vunpack.c.l.b16 %v30
  %v173 = vunpack.c.h.b16 %v30
  %v174 = vunpack.c.l.b16 %v31
  %v175 = vunpack.c.h.b16 %v31
  %v176 = vunpack.c.l.b16 %v32
  %v177 = vunpack.c.h.b16 %v32
  %v178 = vunpack.c.l.b16 %v33
  %v179 = vunpack.c.h.b16 %v33
  %v180 = vunpack.c.l.b16 %v34
  %v181 = vunpack.c.h.b16 %v34
  %v182 = vunpack.c.l.b16 %v35
  %v183 = vunpack.c.h.b16 %v35
  %v184 = vunpack.c.l.b16 %v36
  %v185 = vunpack.c.h.b16 %v36
  %v186 = vunpack.c.l.b16 %v37
  %v187 = vunpack.c.h.b16 %v37
  %v188 = vunpack.c.l.b16 %v38
  %v189 = vunpack.c.h.b16 %v38
  %v190 = vunpack.c.l.b16 %v39
  %v191 = vunpack.c.h.b16 %v39
  %v192 = vunpack.c.l.b16 %v40
  %v193 = vunpack.c.h.b16 %v40
  %v194 = vunpack.c.l.b16 %v41
  %v195 = vunpack.c.h.b16 %v41
  %v196 = vunpack.c.l.b16 %v42
  %v197 = vunpack.c.h.b16 %v42
  %v198 = vunpack.c.l.b16 %v43
  %v199 = vunpack.c.h.b16 %v43
  %v200 = vunpack.c.l.b16 %v44
  %v201 = vunpack.c.h.b16 %v44
  %v202 = vunpack.c.l.b16 %v45
  %v203 = vunpack.c.h.b16 %v45
  %v204 = vunpack.c.l.b16 %v46
  %v205 = vunpack.c.h.b16 %v46
  %v206 = vunpack.c.l.b16 %v47
  %v207 = vunpack.c.h.b16 %v47
  %v208 = vunpack.c.l.b16 %v48
  %v209 = vunpack.c.h.b16 %v48
  %v210 = vunpack.c.l.b16 %v49
  %v211 = vunpack.c.h.b16 %v49
  %v212 = vunpack.c.l.b16 %v50
  %v213 = vunpack.c.h.b16 %v50
  %v214 = vunpack.c.l.b16 %v51
  %v215 = vunpack.c.h.b16 %v51
  %v216 = vunpack.c.l.b16 %v52
  %v217 = vunpack.c.h.b16 %v52
  %v218 = vunpack.c.l.b16 %v53
  %v219 = vunpack.c.h.b16 %v53
  %v220 = vunpack.c.l.b16 %v54
  %v221 = vunpack.c.h.b16 %v54
  %v222 = vunpack.c.l.b16 %v55
  %v223 = vunpack.c.h.b16 %v55
  %v224 = vunpack.c.l.b16 %v56
  %v225 = vunpack.c.h.b16 %v56
  %v226 = vunpack.c.l.b16 %v57
  %v227 = vunpack.c.h.b16 %v57
  %v228 = vunpack.c.l.b16 %v58
  %v229 = vunpack.c.h.b16 %v58
  %v230 = vunpack.c.l.b16 %v59
  %v231 = vunpack.c.h.b16 %v59
  %v232 = vunpack.c.l.b16 %v60
  %v233 = vunpack.c.h.b16 %v60
  %v234 = vunpack.c.l.b16 %v61
  %v235 = vunpack.c.h.b16 %v61
  %v236 = vunpack.c.l.b16 %v62
  %v237 = vunpack.c.h.b16 %v62
  %v238 = vunpack.c.l.b16 %v63
  %v239 = vunpack.c.h.b16 %v63
  %v240 = vunpack.c.l.b16 %v64
  %v241 = vunpack.c.h.b16 %v64
  %v242 = vunpack.c.l.b16 %v65
  %v243 = vunpack.c.h.b16 %v65
  %v244 = vunpack.c.l.b16 %v66
  %v245 = vunpack.c.h.b16 %v66
  %v246 = vunpack.c.l.b16 %v67
  %v247 = vunpack.c.h.b16 %v67
  %v248 = vunpack.c.l.b16 %v68
  %v249 = vunpack.c.h.b16 %v68
  %v250 = vunpack.c.l.b16 %v69
  %v251 = vunpack.c.h.b16 %v69
  %v252 = vunpack.c.l.b16 %v70
  %v253 = vunpack.c.h.b16 %v70
  %v254 = vunpack.c.l.b16 %v71
  %v255 = vunpack.c.h.b16 %v71
  %v256 = vunpack.c.l.b16 %v72
  %v257 = vunpack.c.h.b16 %v72
  %v258 = vunpack.c.l.b16 %v73
  %v259 = vunpack.c.h.b16 %v73
  %v260 = vunpack.c.l.b16 %v74
  %v261 = vunpack.c.h.b16 %v74
  %v262 = vunpack.c.l.b16 %v75
  %v263 = vunpack.c.h.b16 %v75
  %v264 = vunpack.c.l.b16 %v76
  %v265 = vunpack.c.h.b16 %v76
  %v266 = vunpack.c.l.b16 %v77
  %v267 = vunpack.c.h.b16 %v77
  %v268 = vunpack.c.l.b16 %v78
  %v269 = vunpack.c.h.b16 %v78
  %v270 = vunpack.c.l.b16 %v79
  %v271 = vunpack.c.h.b16 %v79
  %v272 = vpack.c.b16 %v152, %v144
  %v273 = vpack.c.b16 %v153, %v145
  %v274 = vpack.c.b16 %v154, %v146
  %v275 = vpack.c.b16 %v155, %v147
  %v276 = vpack.c.b16 %v156, %v148
  %v277 = vpack.c.b16 %v157, %v149
  %v278 = vpack.c.b16 %v158, %v150
  %v279 = vpack.c.b16 %v159, %v151
  %v280 = vpack.c.b16 %v168, %v160
  %v281 = vpack.c.b16 %v169, %v161
  %v282 = vpack.c.b16 %v170, %v162
  %v283 = vpack.c.b16 %v171, %v163
  %v284 = vpack.c.b16 %v172, %v164
  %v285 = vpack.c.b16 %v173, %v165
  %v286 = vpack.c.b16 %v174, %v166
  %v287 = vpack.c.b16 %v175, %v167
  %v288 = vpack.c.b16 %v184, %v176
  %v289 = vpack.c.b16 %v185, %v177
  %v290 = vpack.c.b16 %v186, %v178
  %v291 = vpack.c.b16 %v187, %v179
  %v292 = vpack.c.b16 %v188, %v180
  %v293 = vpack.c.b16 %v189, %v181
  %v294 = vpack.c.b16 %v190, %v182
  %v295 = vpack.c.b16 %v191, %v183
  %v296 = vpack.c.b16 %v200, %v192
  %v297 = vpack.c.b16 %v201, %v193
  %v298 = vpack.c.b16 %v202, %v194
  %v299 = vpack.c.b16 %v203, %v195
  %v300 = vpack.c.b16 %v204, %v196
  %v301 = vpack.c.b16 %v205, %v197
  %v302 = vpack.c.b16 %v206, %v198
  %v303 = vpack.c.b16 %v207, %v199
  %v304 = vpack.c.b16 %v216, %v208
  %v305 = vpack.c.b16 %v217, %v209
  %v306 = vpack.c.b16 %v218, %v210
  %v307 = vpack.c.b16 %v219, %v211
  %v308 = vpack.c.b16 %v220, %v212
  %v309 = vpack.c.b16 %v221, %v213
  %v310 = vpack.c.b16 %v222, %v214
  %v311 = vpack.c.b16 %v223, %v215
  %v312 = vpack.c.b16 %v232, %v224
  %v313 = vpack.c.b16 %v233, %v225
  %v314 = vpack.c.b16 %v234, %v226
  %v315 = vpack.c.b16 %v235, %v227
  %v316 = vpack.c.b16 %v236, %v228
  %v317 = vpack.c.b16 %v237, %v229
  %v318 = vpack.c.b16 %v238, %v230
  %v319 = vpack.c.b16 %v239, %v231
  %v320 = vpack.c.b16 %v248, %v240
  %v321 = vpack.c.b16 %v249, %v241
  %v322 = vpack.c.b16 %v250, %v242
  %v323 = vpack.c.b16 %v251, %v243
  %v324 = vpack.c.b16 %v252, %v244
  %v325 = vpack.c.b16 %v253, %v245
  %v326 = vpack.c.b16 %v254, %v246
  %v327 = vpack.c.b16 %v255, %v247
  %v328 = vpack.c.b16 %v264, %v256
  %v329 = vpack.c.b16 %v265, %v257
  %v330 = vpack.c.b16 %v266, %v258
  %v331 = vpack.c.b16 %v267, %v259
  %v332 = vpack.c.b16 %v268, %v260
  %v333 = vpack.c.b16 %v269, %v261
  %v334 = vpack.c.b16 %v270, %v262
  %v335 = vpack.c.b16 %v271, %v263
  %400 = vmatprep.subr.bf16.mxu0 %v329
  %401 = vmatpush1.bf16.msra.mxu0 %v328
  %402 = vmatprep.subr.bf16.mxu0 %v321
  %403 = vmatpush1.bf16.msra.mxu0 %v320
  %404 = vmatprep.subr.bf16.mxu0 %v313
  %405 = vmatpush1.bf16.msra.mxu0 %v312
  %406 = vmatprep.subr.bf16.mxu0 %v305
  %407 = vmatpush1.bf16.msra.mxu0 %v304
  %408 = vmatprep.subr.bf16.mxu0 %v297
  %409 = vmatpush1.bf16.msra.mxu0 %v296
  %410 = vmatprep.subr.bf16.mxu0 %v289
  %411 = vmatpush1.bf16.msra.mxu0 %v288
  %412 = vmatprep.subr.bf16.mxu0 %v281
  %413 = vmatpush1.bf16.msra.mxu0 %v280
  %414 = vmatprep.subr.bf16.mxu0 %v273
  %415 = vmatpush1.bf16.msra.mxu0 %v272
  %416 = vmatprep.subr.bf16.mxu0 0
  %417 = vmatpush2.bf16.msra.mxu0 0
  %418 = vmatprep.subr.bf16.mxu0 0
  %419 = vmatpush2.bf16.msra.mxu0 0
  %420 = vmatprep.subr.bf16.mxu0 0
  %421 = vmatpush2.bf16.msra.mxu0 0
  %422 = vmatprep.subr.bf16.mxu0 0
  %423 = vmatpush2.bf16.msra.mxu0 0
  %424 = vmatprep.subr.bf16.mxu0 0
  %425 = vmatpush2.bf16.msra.mxu0 0
  %426 = vmatprep.subr.bf16.mxu0 0
  %427 = vmatpush2.bf16.msra.mxu0 0
  %428 = vmatprep.subr.bf16.mxu0 0
  %429 = vmatpush2.bf16.msra.mxu0 0
  %430 = vmatprep.subr.bf16.mxu0 0
  %431 = vmatpush2.bf16.msra.mxu0 0
  %432 = vmatprep.mubr.bf16.mxu0 0
  %433 = vmatmul.mubr.bf16.gmra.mxu0 %v15
  %v434 = vpop.f32.mrf.mxu0
  %v435 = vadd.f32 0.0, %v434
  %v436 = vpop.f32.mrf.mxu0
  %v437 = vadd.f32 0.0, %v436
  %v438 = vpop.f32.mrf.mxu0
  %v439 = vpop.f32.mrf.mxu0
  %440 = vdwg.mxu0
  %441 = vmatprep.subr.bf16.mxu0 %v331
  %442 = vmatpush1.bf16.msra.mxu0 %v330
  %443 = vmatprep.subr.bf16.mxu0 %v323
  %444 = vmatpush1.bf16.msra.mxu0 %v322
  %445 = vmatprep.subr.bf16.mxu0 %v315
  %446 = vmatpush1.bf16.msra.mxu0 %v314
  %447 = vmatprep.subr.bf16.mxu0 %v307
  %448 = vmatpush1.bf16.msra.mxu0 %v306
  %449 = vmatprep.subr.bf16.mxu0 %v299
  %450 = vmatpush1.bf16.msra.mxu0 %v298
  %451 = vmatprep.subr.bf16.mxu0 %v291
  %452 = vmatpush1.bf16.msra.mxu0 %v290
  %453 = vmatprep.subr.bf16.mxu0 %v283
  %454 = vmatpush1.bf16.msra.mxu0 %v282
  %455 = vmatprep.subr.bf16.mxu0 %v275
  %456 = vmatpush1.bf16.msra.mxu0 %v274
  %457 = vmatprep.subr.bf16.mxu0 0
  %458 = vmatpush2.bf16.msra.mxu0 0
  %459 = vmatprep.subr.bf16.mxu0 0
  %460 = vmatpush2.bf16.msra.mxu0 0
  %461 = vmatprep.subr.bf16.mxu0 0
  %462 = vmatpush2.bf16.msra.mxu0 0
  %463 = vmatprep.subr.bf16.mxu0 0
  %464 = vmatpush2.bf16.msra.mxu0 0
  %465 = vmatprep.subr.bf16.mxu0 0
  %466 = vmatpush2.bf16.msra.mxu0 0
  %467 = vmatprep.subr.bf16.mxu0 0
  %468 = vmatpush2.bf16.msra.mxu0 0
  %469 = vmatprep.subr.bf16.mxu0 0
  %470 = vmatpush2.bf16.msra.mxu0 0
  %471 = vmatprep.subr.bf16.mxu0 0
  %472 = vmatpush2.bf16.msra.mxu0 0
  %473 = vmatprep.mubr.bf16.mxu0 0
  %474 = vmatmul.mubr.bf16.gmra.mxu0 %v15
  %v475 = vpop.f32.mrf.mxu0
  %v476 = vadd.f32 0.0, %v475
  %v477 = vpop.f32.mrf.mxu0
  %v478 = vadd.f32 0.0, %v477
  %v479 = vpop.f32.mrf.mxu0
  %v480 = vpop.f32.mrf.mxu0
  %481 = vdwg.mxu0
  %482 = vmatprep.subr.bf16.mxu0 %v333
  %483 = vmatpush1.bf16.msra.mxu0 %v332
  %484 = vmatprep.subr.bf16.mxu0 %v325
  %485 = vmatpush1.bf16.msra.mxu0 %v324
  %486 = vmatprep.subr.bf16.mxu0 %v317
  %487 = vmatpush1.bf16.msra.mxu0 %v316
  %488 = vmatprep.subr.bf16.mxu0 %v309
  %489 = vmatpush1.bf16.msra.mxu0 %v308
  %490 = vmatprep.subr.bf16.mxu0 %v301
  %491 = vmatpush1.bf16.msra.mxu0 %v300
  %492 = vmatprep.subr.bf16.mxu0 %v293
  %493 = vmatpush1.bf16.msra.mxu0 %v292
  %494 = vmatprep.subr.bf16.mxu0 %v285
  %495 = vmatpush1.bf16.msra.mxu0 %v284
  %496 = vmatprep.subr.bf16.mxu0 %v277
  %497 = vmatpush1.bf16.msra.mxu0 %v276
  %498 = vmatprep.subr.bf16.mxu0 0
  %499 = vmatpush2.bf16.msra.mxu0 0
  %500 = vmatprep.subr.bf16.mxu0 0
  %501 = vmatpush2.bf16.msra.mxu0 0
  %502 = vmatprep.subr.bf16.mxu0 0
  %503 = vmatpush2.bf16.msra.mxu0 0
  %504 = vmatprep.subr.bf16.mxu0 0
  %505 = vmatpush2.bf16.msra.mxu0 0
  %506 = vmatprep.subr.bf16.mxu0 0
  %507 = vmatpush2.bf16.msra.mxu0 0
  %508 = vmatprep.subr.bf16.mxu0 0
  %509 = vmatpush2.bf16.msra.mxu0 0
  %510 = vmatprep.subr.bf16.mxu0 0
  %511 = vmatpush2.bf16.msra.mxu0 0
  %512 = vmatprep.subr.bf16.mxu0 0
  %513 = vmatpush2.bf16.msra.mxu0 0
  %514 = vmatprep.mubr.bf16.mxu0 0
  %515 = vmatmul.mubr.bf16.gmra.mxu0 %v15
  %v516 = vpop.f32.mrf.mxu0
  %v517 = vadd.f32 0.0, %v516
  %v518 = vpop.f32.mrf.mxu0
  %v519 = vadd.f32 0.0, %v518
  %v520 = vpop.f32.mrf.mxu0
  %v521 = vpop.f32.mrf.mxu0
  %522 = vdwg.mxu0
  %523 = vmatprep.subr.bf16.mxu0 %v335
  %524 = vmatpush1.bf16.msra.mxu0 %v334
  %525 = vmatprep.subr.bf16.mxu0 %v327
  %526 = vmatpush1.bf16.msra.mxu0 %v326
  %527 = vmatprep.subr.bf16.mxu0 %v319
  %528 = vmatpush1.bf16.msra.mxu0 %v318
  %529 = vmatprep.subr.bf16.mxu0 %v311
  %530 = vmatpush1.bf16.msra.mxu0 %v310
  %531 = vmatprep.subr.bf16.mxu0 %v303
  %532 = vmatpush1.bf16.msra.mxu0 %v302
  %533 = vmatprep.subr.bf16.mxu0 %v295
  %534 = vmatpush1.bf16.msra.mxu0 %v294
  %535 = vmatprep.subr.bf16.mxu0 %v287
  %536 = vmatpush1.bf16.msra.mxu0 %v286
  %537 = vmatprep.subr.bf16.mxu0 %v279
  %538 = vmatpush1.bf16.msra.mxu0 %v278
  %539 = vmatprep.subr.bf16.mxu0 0
  %540 = vmatpush2.bf16.msra.mxu0 0
  %541 = vmatprep.subr.bf16.mxu0 0
  %542 = vmatpush2.bf16.msra.mxu0 0
  %543 = vmatprep.subr.bf16.mxu0 0
  %544 = vmatpush2.bf16.msra.mxu0 0
  %545 = vmatprep.subr.bf16.mxu0 0
  %546 = vmatpush2.bf16.msra.mxu0 0
  %547 = vmatprep.subr.bf16.mxu0 0
  %548 = vmatpush2.bf16.msra.mxu0 0
  %549 = vmatprep.subr.bf16.mxu0 0
  %550 = vmatpush2.bf16.msra.mxu0 0
  %551 = vmatprep.subr.bf16.mxu0 0
  %552 = vmatpush2.bf16.msra.mxu0 0
  %553 = vmatprep.subr.bf16.mxu0 0
  %554 = vmatpush2.bf16.msra.mxu0 0
  %555 = vmatprep.mubr.bf16.mxu0 0
  %556 = vmatmul.mubr.bf16.gmra.mxu0 %v15
  %v557 = vpop.f32.mrf.mxu0
  %v558 = vadd.f32 0.0, %v557
  %v559 = vpop.f32.mrf.mxu0
  %v560 = vadd.f32 0.0, %v559
  %v561 = vpop.f32.mrf.mxu0
  %v562 = vpop.f32.mrf.mxu0
  %563 = vdwg.mxu0
  %v564 = vadd.f32 %v435, %v437
  %v565 = vadd.f32 %v564, %v476
  %v566 = vadd.f32 %v565, %v478
  %567 = vadd.xlane.f32.xlu0 %v566
  %v568 = vpop.xlane.xlu0 %567
  %v569 = vrcp.pop 512.0
  %v570 = vmul.f32 %v568, %v569
  %v571 = vsub.f32 %v435, %v570
  %v572 = vsub.f32 %v437, %v570
  %v573 = vsub.f32 %v476, %v570
  %v574 = vsub.f32 %v478, %v570
  %v575 = vmul.f32 %v571, %v571
  %v576 = vmul.f32 %v572, %v572
  %v577 = vmul.f32 %v573, %v573
  %v578 = vmul.f32 %v574, %v574
  %v579 = vadd.f32 %v575, %v576
  %v580 = vadd.f32 %v579, %v577
  %v581 = vadd.f32 %v580, %v578
  %582 = vadd.xlane.f32.xlu0 %v581
  %v583 = vpop.xlane.xlu0 %582
  %v584 = vmul.f32 %v583, %v569
  %v585 = vadd.f32 %v584, 1e-05
  %v586 = vrsqrt.pop %v585
  %v587 = vmul.f32 %v571, %v586
  %v588 = vmul.f32 %v572, %v586
  %v589 = vmul.f32 %v573, %v586
  %v590 = vmul.f32 %v574, %v586
  %v591 = vmax.f32 %v587, 0.0
  %v592 = vmax.f32 %v588, 0.0
  %v593 = vmax.f32 %v589, 0.0
  %v594 = vmax.f32 %v590, 0.0
  %v595 = vld [vmem:[%s2] sm:$0xf]
  %v596 = vpack.c.bf16 %v591, %v591
  %v597 = vpack.c.bf16 %v592, %v592
  %v598 = vpack.c.bf16 %v593, %v593
  %v599 = vpack.c.bf16 %v594, %v594
  %vm600 = vcmask 64512
  %v602 = vsel %vm600, %v595, 0
  %vm604 = vcmask 1043456
  %v606 = vsel %vm604, %v596, 0
  %v609 = vsel %vm604, %v597, 0
  %v612 = vsel %vm604, %v598, 0
  %v615 = vsel %vm604, %v599, 0
  %617 = vmatprep.subr.bf16.mxu0 0
  %618 = vmatpush1.bf16.msra.mxu0 0
  %619 = vmatprep.subr.bf16.mxu0 0
  %620 = vmatpush1.bf16.msra.mxu0 0
  %621 = vmatprep.subr.bf16.mxu0 0
  %622 = vmatpush1.bf16.msra.mxu0 0
  %623 = vmatprep.subr.bf16.mxu0 0
  %624 = vmatpush1.bf16.msra.mxu0 0
  %625 = vmatprep.subr.bf16.mxu0 0
  %626 = vmatpush1.bf16.msra.mxu0 0
  %627 = vmatprep.subr.bf16.mxu0 0
  %628 = vmatpush1.bf16.msra.mxu0 0
  %629 = vmatprep.subr.bf16.mxu0 0
  %630 = vmatpush1.bf16.msra.mxu0 0
  %631 = vmatprep.subr.bf16.mxu0 %v609
  %632 = vmatpush1.bf16.msra.mxu0 %v606
  %633 = vmatprep.subr.bf16.mxu0 0
  %634 = vmatpush2.bf16.msra.mxu0 0
  %635 = vmatprep.subr.bf16.mxu0 0
  %636 = vmatpush2.bf16.msra.mxu0 0
  %637 = vmatprep.subr.bf16.mxu0 0
  %638 = vmatpush2.bf16.msra.mxu0 0
  %639 = vmatprep.subr.bf16.mxu0 0
  %640 = vmatpush2.bf16.msra.mxu0 0
  %641 = vmatprep.subr.bf16.mxu0 0
  %642 = vmatpush2.bf16.msra.mxu0 0
  %643 = vmatprep.subr.bf16.mxu0 0
  %644 = vmatpush2.bf16.msra.mxu0 0
  %645 = vmatprep.subr.bf16.mxu0 0
  %646 = vmatpush2.bf16.msra.mxu0 0
  %647 = vmatprep.subr.bf16.mxu0 0
  %648 = vmatpush2.bf16.msra.mxu0 0
  %649 = vmatprep.mubr.bf16.mxu0 0
  %650 = vmatmul.mubr.bf16.gmra.mxu0 %v602
  %v651 = vpop.f32.mrf.mxu0
  %v652 = vadd.f32 0.0, %v651
  %v653 = vpop.f32.mrf.mxu0
  %v654 = vadd.f32 0.0, %v653
  %v655 = vpop.f32.mrf.mxu0
  %v656 = vpop.f32.mrf.mxu0
  %657 = vdwg.mxu0
  %658 = vmatprep.subr.bf16.mxu0 0
  %659 = vmatpush1.bf16.msra.mxu0 0
  %660 = vmatprep.subr.bf16.mxu0 0
  %661 = vmatpush1.bf16.msra.mxu0 0
  %662 = vmatprep.subr.bf16.mxu0 0
  %663 = vmatpush1.bf16.msra.mxu0 0
  %664 = vmatprep.subr.bf16.mxu0 0
  %665 = vmatpush1.bf16.msra.mxu0 0
  %666 = vmatprep.subr.bf16.mxu0 0
  %667 = vmatpush1.bf16.msra.mxu0 0
  %668 = vmatprep.subr.bf16.mxu0 0
  %669 = vmatpush1.bf16.msra.mxu0 0
  %670 = vmatprep.subr.bf16.mxu0 0
  %671 = vmatpush1.bf16.msra.mxu0 0
  %672 = vmatprep.subr.bf16.mxu0 %v615
  %673 = vmatpush1.bf16.msra.mxu0 %v612
  %674 = vmatprep.subr.bf16.mxu0 0
  %675 = vmatpush2.bf16.msra.mxu0 0
  %676 = vmatprep.subr.bf16.mxu0 0
  %677 = vmatpush2.bf16.msra.mxu0 0
  %678 = vmatprep.subr.bf16.mxu0 0
  %679 = vmatpush2.bf16.msra.mxu0 0
  %680 = vmatprep.subr.bf16.mxu0 0
  %681 = vmatpush2.bf16.msra.mxu0 0
  %682 = vmatprep.subr.bf16.mxu0 0
  %683 = vmatpush2.bf16.msra.mxu0 0
  %684 = vmatprep.subr.bf16.mxu0 0
  %685 = vmatpush2.bf16.msra.mxu0 0
  %686 = vmatprep.subr.bf16.mxu0 0
  %687 = vmatpush2.bf16.msra.mxu0 0
  %688 = vmatprep.subr.bf16.mxu0 0
  %689 = vmatpush2.bf16.msra.mxu0 0
  %690 = vmatprep.mubr.bf16.mxu0 0
  %691 = vmatmul.mubr.bf16.gmra.mxu0 %v602
  %v692 = vpop.f32.mrf.mxu0
  %v693 = vadd.f32 0.0, %v692
  %v694 = vpop.f32.mrf.mxu0
  %v695 = vadd.f32 0.0, %v694
  %v696 = vpop.f32.mrf.mxu0
  %v697 = vpop.f32.mrf.mxu0
  %698 = vdwg.mxu0
  %v699 = vadd.f32 %v652, %v654
  %v700 = vadd.f32 %v699, %v693
  %v701 = vadd.f32 %v700, %v695
  %702 = vadd.xlane.f32.xlu0 %v701
  %v703 = vpop.xlane.xlu0 %702
  %v704 = vmul.f32 %v703, %v569
  %v705 = vsub.f32 %v652, %v704
  %v706 = vsub.f32 %v654, %v704
  %v707 = vsub.f32 %v693, %v704
  %v708 = vsub.f32 %v695, %v704
  %v709 = vmul.f32 %v705, %v705
  %v710 = vmul.f32 %v706, %v706
  %v711 = vmul.f32 %v707, %v707
  %v712 = vmul.f32 %v708, %v708
  %v713 = vadd.f32 %v709, %v710
  %v714 = vadd.f32 %v713, %v711
  %v715 = vadd.f32 %v714, %v712
  %716 = vadd.xlane.f32.xlu0 %v715
  %v717 = vpop.xlane.xlu0 %716
  %v718 = vmul.f32 %v717, %v569
  %v719 = vadd.f32 %v718, 1e-05
  %v720 = vrsqrt.pop %v719
  %v721 = vmul.f32 %v705, %v720
  %v722 = vmul.f32 %v706, %v720
  %v723 = vmul.f32 %v707, %v720
  %v724 = vmul.f32 %v708, %v720
  %v725 = vmax.f32 %v721, 0.0
  %v726 = vmax.f32 %v722, 0.0
  %v727 = vmax.f32 %v723, 0.0
  %v728 = vmax.f32 %v724, 0.0
  %729 = vst [vmem:[%s3] sm:$0xff] %v725
  %730 = vst [vmem:[%s3 + $0x8] sm:$0xff] %v726
  %731 = vst [vmem:[%s3 + $0x10] sm:$0xff] %v727
  %732 = vst [vmem:[%s3 + $0x18] sm:$0xff] %v728
  %v733 = vadd.f32 %v517, %v519
  %v734 = vadd.f32 %v733, %v558
  %v735 = vadd.f32 %v734, %v560
  %736 = vadd.xlane.f32.xlu0 %v735
  %v737 = vpop.xlane.xlu0 %736
  %v738 = vmul.f32 %v737, %v569
  %v739 = vsub.f32 %v517, %v738
  %v740 = vsub.f32 %v519, %v738
  %v741 = vsub.f32 %v558, %v738
  %v742 = vsub.f32 %v560, %v738
  %v743 = vmul.f32 %v739, %v739
  %v744 = vmul.f32 %v740, %v740
  %v745 = vmul.f32 %v741, %v741
  %v746 = vmul.f32 %v742, %v742
  %v747 = vadd.f32 %v743, %v744
  %v748 = vadd.f32 %v747, %v745
  %v749 = vadd.f32 %v748, %v746
  %750 = vadd.xlane.f32.xlu0 %v749
  %v751 = vpop.xlane.xlu0 %750
  %v752 = vmul.f32 %v751, %v569
  %v753 = vadd.f32 %v752, 1e-05
  %v754 = vrsqrt.pop %v753
  %v755 = vmul.f32 %v739, %v754
  %v756 = vmul.f32 %v740, %v754
  %v757 = vmul.f32 %v741, %v754
  %v758 = vmul.f32 %v742, %v754
  %v759 = vmax.f32 %v755, 0.0
  %v760 = vmax.f32 %v756, 0.0
  %v761 = vmax.f32 %v757, 0.0
  %v762 = vmax.f32 %v758, 0.0
  %v763 = vld [vmem:[%s2] sm:$0xf]
  %v764 = vpack.c.bf16 %v759, %v759
  %v765 = vpack.c.bf16 %v760, %v760
  %v766 = vpack.c.bf16 %v761, %v761
  %v767 = vpack.c.bf16 %v762, %v762
  %v769 = vsel %vm600, %v763, 0
  %v772 = vsel %vm604, %v764, 0
  %v775 = vsel %vm604, %v765, 0
  %v778 = vsel %vm604, %v766, 0
  %v781 = vsel %vm604, %v767, 0
  %783 = vmatprep.subr.bf16.mxu0 0
  %784 = vmatpush1.bf16.msra.mxu0 0
  %785 = vmatprep.subr.bf16.mxu0 0
  %786 = vmatpush1.bf16.msra.mxu0 0
  %787 = vmatprep.subr.bf16.mxu0 0
  %788 = vmatpush1.bf16.msra.mxu0 0
  %789 = vmatprep.subr.bf16.mxu0 0
  %790 = vmatpush1.bf16.msra.mxu0 0
  %791 = vmatprep.subr.bf16.mxu0 0
  %792 = vmatpush1.bf16.msra.mxu0 0
  %793 = vmatprep.subr.bf16.mxu0 0
  %794 = vmatpush1.bf16.msra.mxu0 0
  %795 = vmatprep.subr.bf16.mxu0 0
  %796 = vmatpush1.bf16.msra.mxu0 0
  %797 = vmatprep.subr.bf16.mxu0 %v775
  %798 = vmatpush1.bf16.msra.mxu0 %v772
  %799 = vmatprep.subr.bf16.mxu0 0
  %800 = vmatpush2.bf16.msra.mxu0 0
  %801 = vmatprep.subr.bf16.mxu0 0
  %802 = vmatpush2.bf16.msra.mxu0 0
  %803 = vmatprep.subr.bf16.mxu0 0
  %804 = vmatpush2.bf16.msra.mxu0 0
  %805 = vmatprep.subr.bf16.mxu0 0
  %806 = vmatpush2.bf16.msra.mxu0 0
  %807 = vmatprep.subr.bf16.mxu0 0
  %808 = vmatpush2.bf16.msra.mxu0 0
  %809 = vmatprep.subr.bf16.mxu0 0
  %810 = vmatpush2.bf16.msra.mxu0 0
  %811 = vmatprep.subr.bf16.mxu0 0
  %812 = vmatpush2.bf16.msra.mxu0 0
  %813 = vmatprep.subr.bf16.mxu0 0
  %814 = vmatpush2.bf16.msra.mxu0 0
  %815 = vmatprep.mubr.bf16.mxu0 0
  %816 = vmatmul.mubr.bf16.gmra.mxu0 %v769
  %v817 = vpop.f32.mrf.mxu0
  %v818 = vadd.f32 0.0, %v817
  %v819 = vpop.f32.mrf.mxu0
  %v820 = vadd.f32 0.0, %v819
  %v821 = vpop.f32.mrf.mxu0
  %v822 = vpop.f32.mrf.mxu0
  %823 = vdwg.mxu0
  %824 = vmatprep.subr.bf16.mxu0 0
  %825 = vmatpush1.bf16.msra.mxu0 0
  %826 = vmatprep.subr.bf16.mxu0 0
  %827 = vmatpush1.bf16.msra.mxu0 0
  %828 = vmatprep.subr.bf16.mxu0 0
  %829 = vmatpush1.bf16.msra.mxu0 0
  %830 = vmatprep.subr.bf16.mxu0 0
  %831 = vmatpush1.bf16.msra.mxu0 0
  %832 = vmatprep.subr.bf16.mxu0 0
  %833 = vmatpush1.bf16.msra.mxu0 0
  %834 = vmatprep.subr.bf16.mxu0 0
  %835 = vmatpush1.bf16.msra.mxu0 0
  %836 = vmatprep.subr.bf16.mxu0 0
  %837 = vmatpush1.bf16.msra.mxu0 0
  %838 = vmatprep.subr.bf16.mxu0 %v781
  %839 = vmatpush1.bf16.msra.mxu0 %v778
  %840 = vmatprep.subr.bf16.mxu0 0
  %841 = vmatpush2.bf16.msra.mxu0 0
  %842 = vmatprep.subr.bf16.mxu0 0
  %843 = vmatpush2.bf16.msra.mxu0 0
  %844 = vmatprep.subr.bf16.mxu0 0
  %845 = vmatpush2.bf16.msra.mxu0 0
  %846 = vmatprep.subr.bf16.mxu0 0
  %847 = vmatpush2.bf16.msra.mxu0 0
  %848 = vmatprep.subr.bf16.mxu0 0
  %849 = vmatpush2.bf16.msra.mxu0 0
  %850 = vmatprep.subr.bf16.mxu0 0
  %851 = vmatpush2.bf16.msra.mxu0 0
  %852 = vmatprep.subr.bf16.mxu0 0
  %853 = vmatpush2.bf16.msra.mxu0 0
  %854 = vmatprep.subr.bf16.mxu0 0
  %855 = vmatpush2.bf16.msra.mxu0 0
  %856 = vmatprep.mubr.bf16.mxu0 0
  %857 = vmatmul.mubr.bf16.gmra.mxu0 %v769
  %v858 = vpop.f32.mrf.mxu0
  %v859 = vadd.f32 0.0, %v858
  %v860 = vpop.f32.mrf.mxu0
  %v861 = vadd.f32 0.0, %v860
  %v862 = vpop.f32.mrf.mxu0
  %v863 = vpop.f32.mrf.mxu0
  %864 = vdwg.mxu0
  %v865 = vadd.f32 %v818, %v820
  %v866 = vadd.f32 %v865, %v859
  %v867 = vadd.f32 %v866, %v861
  %868 = vadd.xlane.f32.xlu0 %v867
  %v869 = vpop.xlane.xlu0 %868
  %v870 = vmul.f32 %v869, %v569
  %v871 = vsub.f32 %v818, %v870
  %v872 = vsub.f32 %v820, %v870
  %v873 = vsub.f32 %v859, %v870
  %v874 = vsub.f32 %v861, %v870
  %v875 = vmul.f32 %v871, %v871
  %v876 = vmul.f32 %v872, %v872
  %v877 = vmul.f32 %v873, %v873
  %v878 = vmul.f32 %v874, %v874
  %v879 = vadd.f32 %v875, %v876
  %v880 = vadd.f32 %v879, %v877
  %v881 = vadd.f32 %v880, %v878
  %882 = vadd.xlane.f32.xlu0 %v881
  %v883 = vpop.xlane.xlu0 %882
  %v884 = vmul.f32 %v883, %v569
  %v885 = vadd.f32 %v884, 1e-05
  %v886 = vrsqrt.pop %v885
  %v887 = vmul.f32 %v871, %v886
  %v888 = vmul.f32 %v872, %v886
  %v889 = vmul.f32 %v873, %v886
  %v890 = vmul.f32 %v874, %v886
  %v891 = vmax.f32 %v887, 0.0
  %v892 = vmax.f32 %v888, 0.0
  %v893 = vmax.f32 %v889, 0.0
  %v894 = vmax.f32 %v890, 0.0
  %s895 = scalar_lea.vmem %s3, 32
  %896 = vst [vmem:[%s895] sm:$0xff] %v891
  %897 = vst [vmem:[%s895 + $0x8] sm:$0xff] %v892
  %898 = vst [vmem:[%s895 + $0x10] sm:$0xff] %v893
  %899 = vst [vmem:[%s895 + $0x18] sm:$0xff] %v894
  // Predicated region
  $region14: #{_conv_block_impl.1} parent=0 // pred_check
    _
  $region15: #{_conv_block_impl.1} parent=0 // pred_check_branch
    %901 = sbr.rel (0) target = $region17
  $region16: #{_conv_block_impl.1} parent=0 // pred_region
    _
  $region17: #{_conv_block_impl.1} parent=0 // pred_fallthru
    _
  // Predicated region
  $region18: #{_conv_block_impl.1} parent=0 // pred_check
    _
  $region19: #{_conv_block_impl.1} parent=0 // pred_check_branch
    %903 = sbr.rel (0) target = $region21
  $region20: #{_conv_block_impl.1} parent=0 // pred_region
    _
  $region21: #{_conv_block_impl.1} parent=0 // pred_fallthru
    _

</llo_original>
